<compile_context>
chip_gen: v7x
topology: tpu7x:2x2x1
jax: 0.10.0
libtpu: 0.0.40
codegen_flags: <defaults>
</compile_context>

<pallas_src>
import functools
import math

import jax
import jax.numpy as jnp
from jax.experimental import pallas as pl
from jax.experimental.pallas import tpu as pltpu


# ----------------------------------------------------------------------------
# Pallas kernel 1: batched EMA parameter blend (the module's hot path)
# ----------------------------------------------------------------------------
_EMA_BLOCK_ROWS = 256          # 256 x 1024 f32 = 1 MiB per stream per buffer


def _ema_update_kernel(decay_ref, ema_ref, p_ref, o_ref):
    # o = d * ema + (1 - d) * p ; d is a runtime scalar read from SMEM.
    d = decay_ref[0]
    o_ref[...] = d * ema_ref[...] + (1.0 - d) * p_ref[...]


def _ema_layout(n):
    """Lane/sublane-dense (rows, cols) layout for n flattened parameters."""
    cols = 1024 if n > 8 * 1024 else 128
    rows = pl.cdiv(max(n, 1), cols)
    rows = pl.cdiv(rows, 8) * 8                      # sublane multiple
    if rows > _EMA_BLOCK_ROWS:                       # pad to a block multiple
        rows = pl.cdiv(rows, _EMA_BLOCK_ROWS) * _EMA_BLOCK_ROWS
    return rows, cols


def _pack(tensors, rows, cols):
    """Flatten + concat all parameter tensors into the padded f32 master buffer."""
    flat = jnp.concatenate([jnp.ravel(t).astype(jnp.float32) for t in tensors])
    flat = jnp.pad(flat, (0, rows * cols - flat.shape[0]))
    return flat.reshape(rows, cols)


@functools.partial(jax.jit, donate_argnums=(0,))
def _ema_blend(ema_flat, p_flat, decay):
    rows, cols = ema_flat.shape
    block_rows = _EMA_BLOCK_ROWS if rows % _EMA_BLOCK_ROWS == 0 else rows
    decay_arr = jnp.asarray(decay, jnp.float32).reshape(1)
    return pl.pallas_call(
        _ema_update_kernel,
        out_shape=jax.ShapeDtypeStruct((rows, cols), jnp.float32),
        grid=(rows // block_rows,),
        in_specs=[
            pl.BlockSpec(memory_space=pltpu.MemorySpace.SMEM),       # decay
            pl.BlockSpec((block_rows, cols), lambda i: (i, 0)),      # ema state
            pl.BlockSpec((block_rows, cols), lambda i: (i, 0)),      # new params
        ],
        out_specs=pl.BlockSpec((block_rows, cols), lambda i: (i, 0)),
        input_output_aliases={1: 0},                 # blend in place (P8)
        compiler_params=pltpu.CompilerParams(
            dimension_semantics=("parallel",)),
    )(decay_arr, ema_flat, p_flat)


# ----------------------------------------------------------------------------
# Pallas kernel 2: forward pass of the wrapped model (3x3 conv, padding=1)
# ----------------------------------------------------------------------------
def _conv3x3_kernel(x_ref, w_ref, b_ref, o_ref):
    # x_ref: (1, H, W*Cin)       one image, w-major / ci-minor flattening
    # w_ref: (3, W*Cin, W*Cout)  banded weights (one matrix per row offset kh);
    #                            kw taps and W zero-padding are folded inside.
    # b_ref: (1, W*Cout)         bias tiled over W
    # o_ref: (H, W*Cout)         lane-dense output rows (W*Cout = 128 lanes)
    H = x_ref.shape[1]
    x = x_ref[0]                                                     # (H, WC)

    # centre row taps (kh = 1) + bias
    o_ref[...] = jnp.dot(x, w_ref[1],
                         preferred_element_type=jnp.float32) + b_ref[...]
    # row above (kh = 0): input row h-1 contributes to output rows 1..H-1
    o_ref[pl.ds(1, H - 1), :] += jnp.dot(
        x[:H - 1, :], w_ref[0], preferred_element_type=jnp.float32)
    # row below (kh = 2): input row h+1 contributes to output rows 0..H-2
    o_ref[pl.ds(0, H - 1), :] += jnp.dot(
        x[1:, :], w_ref[2], preferred_element_type=jnp.float32)


@jax.jit
def conv3x3_forward(x_nchw, w_oihw, bias):
    """Forward of the wrapped model. Input NCHW (PyTorch convention)."""
    N, Cin, H, W = x_nchw.shape
    Cout = w_oihw.shape[0]

    # --- layout glue (plain JAX, no extra HBM pad of the activation) --------
    x2 = jnp.transpose(x_nchw, (0, 2, 3, 1)).reshape(N, H, W * Cin)
    x2 = x2.astype(jnp.float32)

    # Banded weight: B[kh, w'*Cin+ci, w*Cout+co] = w[co,ci,kh,kw] for
    # kw = w'-w+1 in [0,3), zero otherwise (folds the W zero-padding).
    w_hwio = jnp.transpose(w_oihw, (2, 3, 1, 0)).astype(jnp.float32)  # (3,3,Ci,Co)
    kw = jnp.arange(W)[:, None] - jnp.arange(W)[None, :] + 1          # (W', W)
    valid = ((kw >= 0) & (kw <= 2)).astype(jnp.float32)
    band = w_hwio[:, jnp.clip(kw, 0, 2)]                              # (3,W',W,Ci,Co)
    band = band * valid[None, :, :, None, None]
    w_band = jnp.transpose(band, (0, 1, 3, 2, 4)).reshape(3, W * Cin, W * Cout)
    b_row = jnp.tile(bias.astype(jnp.float32), (W,)).reshape(1, W * Cout)

    out = pl.pallas_call(
        _conv3x3_kernel,
        out_shape=jax.ShapeDtypeStruct((N * H, W * Cout), jnp.float32),
        grid=(N,),
        in_specs=[
            pl.BlockSpec((1, H, W * Cin), lambda n: (n, 0, 0)),
            pl.BlockSpec((3, W * Cin, W * Cout), lambda n: (0, 0, 0)),
            pl.BlockSpec((1, W * Cout), lambda n: (0, 0)),
        ],
        out_specs=pl.BlockSpec((H, W * Cout), lambda n: (n, 0)),
        compiler_params=pltpu.CompilerParams(
            dimension_semantics=("parallel",)),
    )(x2, w_band, b_row)

    out = out.reshape(N, H, W, Cout)                 # (N*H, W*Cout) -> NHWC
    return jnp.transpose(out, (0, 3, 1, 2)).astype(x_nchw.dtype)   # -> NCHW


# ----------------------------------------------------------------------------
# EMA "module" mirroring the PyTorch class semantics
# ----------------------------------------------------------------------------
class EMA:
    def __init__(self, model_params, decay, dynamic_decay=False, algorithm="AEMA"):
        # deepcopy of the wrapped model's parameters, packed into a single
        # f32 master buffer (frozen — no grads in JAX anyway).
        self.param_names = list(model_params.keys())
        self._meta = {}
        off = 0
        for k in self.param_names:
            v = jnp.asarray(model_params[k])
            size = int(math.prod(v.shape))
            self._meta[k] = (off, size, tuple(v.shape), v.dtype)
            off += size
        self._rows, self._cols = _ema_layout(off)
        self._flat = _pack([jnp.asarray(model_params[k]) for k in self.param_names],
                           self._rows, self._cols)
        self.decay = decay
        self.dynamic_decay = dynamic_decay
        self.update_counts = 0
        self.algorithm = algorithm

    # TODO(synk): torch.save-based `save(path)` is file I/O, intentionally omitted.

    @property
    def params(self):
        """Unpack the f32 master buffer back into named parameter tensors."""
        flat = self._flat.reshape(-1)
        out = {}
        for k in self.param_names:
            off, size, shape, dtype = self._meta[k]
            out[k] = flat[off:off + size].reshape(shape).astype(dtype)
        return out

    def _blend(self, tensors):
        p_flat = _pack(tensors, self._rows, self._cols)
        self._flat = _ema_blend(self._flat, p_flat, jnp.float32(self.decay))
        self.update_decay()

    def update_by_model(self, model_params):
        self._blend([jnp.asarray(model_params[k]) for k in self.param_names])

    def update_by_parameters(self, parameters):
        if self.algorithm == "AEMA":
            self.AEMA(parameters)
        elif self.algorithm == "FedAvg":
            self.FedAvg(parameters)
        else:
            raise NotImplementedError

    def AEMA(self, parameters):
        self._blend([jnp.asarray(p) for p in parameters])

    def FedAvg(self, parameters):
        self._flat = _pack([jnp.asarray(p) for p in parameters],
                           self._rows, self._cols)

    def forward(self, x):
        p = self.params
        return conv3x3_forward(x, p["weight"], p["bias"])

    __call__ = forward

    def update_decay(self):
        if not self.dynamic_decay:
            return
        if self.update_counts == 0:
            update_steps = 0.1
        elif self.update_counts == 1:
            update_steps = 0.1
        elif self.update_counts == 2:
            update_steps = 0.2
        else:
            update_steps = 0.4
        update_steps = max(0.01, update_steps)
        new_decay = self.decay + update_steps * self.update_counts
        self.update_counts += 1
        self.decay = min(0.99, new_decay)


# ----------------------------------------------------------------------------
if __name__ == "__main__":
    key = jax.random.PRNGKey(0)
    k1, k2, k3, k4, k5, k6, k7 = jax.random.split(key, 7)

    N, Cin, Cout, H, W = 2, 4, 8, 16, 16

    # Deterministic synthetic "wrapped model" parameters (Conv2d(4, 8, 3, pad=1)).
    w0 = 0.1 * jax.random.normal(k1, (Cout, Cin, 3, 3), jnp.float32)
    b0 = 0.1 * jax.random.normal(k2, (Cout,), jnp.float32)
    model_params = {"weight": w0, "bias": b0}

    ema = EMA(model_params, decay=0.9, dynamic_decay=True, algorithm="AEMA")

    # --- forward pass through the EMA-wrapped model (Pallas conv kernel) ----
    x = jax.random.normal(k3, (N, Cin, H, W), jnp.float32)
    y = jax.block_until_ready(ema.forward(x))

    y_ref = jax.lax.conv_general_dilated(
        x, w0, window_strides=(1, 1), padding="SAME",
        dimension_numbers=("NCHW", "OIHW", "NCHW")) + b0.reshape(1, Cout, 1, 1)
    assert y.shape == (N, Cout, H, W)
    assert jnp.allclose(y, y_ref, atol=1e-4, rtol=1e-4), "conv forward mismatch"

    # --- EMA update #1 (Pallas blend kernel, decay = 0.9) --------------------
    new_w = 0.1 * jax.random.normal(k4, (Cout, Cin, 3, 3), jnp.float32)
    new_b = 0.1 * jax.random.normal(k5, (Cout,), jnp.float32)
    ema.update_by_parameters([new_w, new_b])
    p1 = ema.params
    jax.block_until_ready([p1["weight"], p1["bias"]])

    ref_w1 = 0.9 * w0 + 0.1 * new_w
    ref_b1 = 0.9 * b0 + 0.1 * new_b
    assert jnp.allclose(p1["weight"], ref_w1, atol=1e-6), "EMA weight mismatch (1)"
    assert jnp.allclose(p1["bias"], ref_b1, atol=1e-6), "EMA bias mismatch (1)"
    assert ema.update_counts == 1 and abs(ema.decay - 0.9) < 1e-12

    # --- EMA update #2 (same compiled kernel; decay is a runtime scalar) -----
    new_w2 = 0.1 * jax.random.normal(k6, (Cout, Cin, 3, 3), jnp.float32)
    new_b2 = 0.1 * jax.random.normal(k7, (Cout,), jnp.float32)
    d = ema.decay                                     # 0.9 at blend time
    ema.update_by_parameters([new_w2, new_b2])
    p2 = ema.params
    jax.block_until_ready([p2["weight"], p2["bias"]])

    ref_w2 = d * ref_w1 + (1.0 - d) * new_w2
    ref_b2 = d * ref_b1 + (1.0 - d) * new_b2
    assert jnp.allclose(p2["weight"], ref_w2, atol=1e-6), "EMA weight mismatch (2)"
    assert jnp.allclose(p2["bias"], ref_b2, atol=1e-6), "EMA bias mismatch (2)"
    assert ema.update_counts == 2 and abs(ema.decay - 0.99) < 1e-12

    print("KERNEL_OK")
</pallas_src>

<mosaic_0001>
module attributes {stable_mosaic.version = 11 : i64} {
  func.func @_conv3x3_kernel(%arg0: i32, %arg1: memref<1x16x64xf32, #tpu.memory_space<vmem>>, %arg2: memref<3x64x128xf32, #tpu.memory_space<vmem>>, %arg3: memref<1x128xf32, #tpu.memory_space<vmem>>, %arg4: memref<16x128xf32, #tpu.memory_space<vmem>>) attributes {dimension_semantics = [#tpu.dimension_semantics<parallel>], iteration_bounds = array<i64: 2>, scalar_prefetch = 0 : i64, scratch_operands = 0 : i64, tpu.core_type = #tpu.core_type<tc>, window_params = [{transform_indices = @transform_0, window_bounds = array<i64: 1, 16, 64>}, {pipeline_mode = #tpu.pipeline_mode<synchronous>, transform_indices = @transform_1, window_bounds = array<i64: 3, 64, 128>}, {pipeline_mode = #tpu.pipeline_mode<synchronous>, transform_indices = @transform_2, window_bounds = array<i64: 1, 128>}, {transform_indices = @transform_3, window_bounds = array<i64: 16, 128>}]} {
    %c0 = arith.constant 0 : index
    %c0_0 = arith.constant 0 : index
    %c0_1 = arith.constant 0 : index
    %0 = vector.load %arg1[%c0, %c0_0, %c0_1] : memref<1x16x64xf32, #tpu.memory_space<vmem>>, vector<1x16x64xf32>
    %1 = vector.shape_cast %0 : vector<1x16x64xf32> to vector<16x64xf32>
    %c1 = arith.constant 1 : index
    %c0_2 = arith.constant 0 : index
    %c0_3 = arith.constant 0 : index
    %2 = vector.load %arg2[%c1, %c0_2, %c0_3] : memref<3x64x128xf32, #tpu.memory_space<vmem>>, vector<1x64x128xf32>
    %3 = vector.shape_cast %2 : vector<1x64x128xf32> to vector<64x128xf32>
    %cst = arith.constant dense<0.000000e+00> : vector<16x128xf32>
    %4 = tpu.matmul %1, %3, %cst {dimension_numbers = #tpu.dot_dimension_numbers<[1], [0], [0], [1], [0, 0, 1, 1], [], []>} : vector<16x64xf32>, vector<64x128xf32>, vector<16x128xf32> -> vector<16x128xf32>
    %c0_4 = arith.constant 0 : index
    %c0_5 = arith.constant 0 : index
    %5 = vector.load %arg3[%c0_4, %c0_5] : memref<1x128xf32, #tpu.memory_space<vmem>>, vector<1x128xf32>
    %6 = vector.broadcast %5 : vector<1x128xf32> to vector<16x128xf32>
    %7 = arith.addf %4, %6 : vector<16x128xf32>
    %c0_6 = arith.constant 0 : index
    %c0_7 = arith.constant 0 : index
    %8 = vector.load %arg4[%c0_6, %c0_7] : memref<16x128xf32, #tpu.memory_space<vmem>>, vector<16x128xf32>
    tpu.vector_store %arg4[%c0_6, %c0_7], %7 {strides = array<i32>} : memref<16x128xf32, #tpu.memory_space<vmem>>, vector<16x128xf32>,
    %c1_8 = arith.constant 1 : index
    %c0_9 = arith.constant 0 : index
    %9 = vector.load %arg4[%c1_8, %c0_9] : memref<16x128xf32, #tpu.memory_space<vmem>>, vector<15x128xf32>
    %10 = vector.extract_strided_slice %1 {offsets = [0, 0], sizes = [15, 64], strides = [1, 1]} : vector<16x64xf32> to vector<15x64xf32>
    %c0_10 = arith.constant 0 : index
    %c0_11 = arith.constant 0 : index
    %c0_12 = arith.constant 0 : index
    %11 = vector.load %arg2[%c0_10, %c0_11, %c0_12] : memref<3x64x128xf32, #tpu.memory_space<vmem>>, vector<1x64x128xf32>
    %12 = vector.shape_cast %11 : vector<1x64x128xf32> to vector<64x128xf32>
    %cst_13 = arith.constant dense<0.000000e+00> : vector<15x128xf32>
    %13 = tpu.matmul %10, %12, %cst_13 {dimension_numbers = #tpu.dot_dimension_numbers<[1], [0], [0], [1], [0, 0, 1, 1], [], []>} : vector<15x64xf32>, vector<64x128xf32>, vector<15x128xf32> -> vector<15x128xf32>
    %14 = arith.addf %9, %13 : vector<15x128xf32>
    %c1_14 = arith.constant 1 : index
    %c0_15 = arith.constant 0 : index
    %15 = vector.load %arg4[%c1_14, %c0_15] : memref<16x128xf32, #tpu.memory_space<vmem>>, vector<15x128xf32>
    tpu.vector_store %arg4[%c1_14, %c0_15], %14 {strides = array<i32>} : memref<16x128xf32, #tpu.memory_space<vmem>>, vector<15x128xf32>,
    %c0_16 = arith.constant 0 : index
    %c0_17 = arith.constant 0 : index
    %16 = vector.load %arg4[%c0_16, %c0_17] : memref<16x128xf32, #tpu.memory_space<vmem>>, vector<15x128xf32>
    %17 = vector.extract_strided_slice %1 {offsets = [1, 0], sizes = [15, 64], strides = [1, 1]} : vector<16x64xf32> to vector<15x64xf32>
    %c2 = arith.constant 2 : index
    %c0_18 = arith.constant 0 : index
    %c0_19 = arith.constant 0 : index
    %18 = vector.load %arg2[%c2, %c0_18, %c0_19] : memref<3x64x128xf32, #tpu.memory_space<vmem>>, vector<1x64x128xf32>
    %19 = vector.shape_cast %18 : vector<1x64x128xf32> to vector<64x128xf32>
    %cst_20 = arith.constant dense<0.000000e+00> : vector<15x128xf32>
    %20 = tpu.matmul %17, %19, %cst_20 {dimension_numbers = #tpu.dot_dimension_numbers<[1], [0], [0], [1], [0, 0, 1, 1], [], []>} : vector<15x64xf32>, vector<64x128xf32>, vector<15x128xf32> -> vector<15x128xf32>
    %21 = arith.addf %16, %20 : vector<15x128xf32>
    %c0_21 = arith.constant 0 : index
    %c0_22 = arith.constant 0 : index
    %22 = vector.load %arg4[%c0_21, %c0_22] : memref<16x128xf32, #tpu.memory_space<vmem>>, vector<15x128xf32>
    tpu.vector_store %arg4[%c0_21, %c0_22], %21 {strides = array<i32>} : memref<16x128xf32, #tpu.memory_space<vmem>>, vector<15x128xf32>,
    return
  }
  func.func @transform_0(%arg0: i32) -> (i32, i32, i32) {
    %c0_i32 = arith.constant 0 : i32
    %c0_i32_0 = arith.constant 0 : i32
    %c0_i32_1 = arith.constant 0 : i32
    return %arg0, %c0_i32, %c0_i32_0 : i32, i32, i32
  }
  func.func @transform_1(%arg0: i32) -> (i32, i32, i32) {
    %c0_i32 = arith.constant 0 : i32
    %c0_i32_0 = arith.constant 0 : i32
    %c0_i32_1 = arith.constant 0 : i32
    %c0_i32_2 = arith.constant 0 : i32
    return %c0_i32, %c0_i32_0, %c0_i32_1 : i32, i32, i32
  }
  func.func @transform_2(%arg0: i32) -> (i32, i32) {
    %c0_i32 = arith.constant 0 : i32
    %c0_i32_0 = arith.constant 0 : i32
    %c0_i32_1 = arith.constant 0 : i32
    return %c0_i32, %c0_i32_0 : i32, i32
  }
  func.func @transform_3(%arg0: i32) -> (i32, i32) {
    %c0_i32 = arith.constant 0 : i32
    %c0_i32_0 = arith.constant 0 : i32
    return %arg0, %c0_i32 : i32, i32
  }
}

</mosaic_0001>

<llo_original>
// kernel: tile.8
$region0: #{tile.8}
  #allocation0 [shape = 's32[1]{0}', space=sflag, size = 0x4, scoped, tag = 'scoped memory for tile.8']
  %s0 = inlined_call_operand.vmem [shape: f32[8], index: 0, kind: input, shape index: {}]
  %s1 = inlined_call_operand.vmem [shape: f32[16,8], index: 1, kind: output, shape index: {}]
  // Predicated region
  $region2: #{tile.8} parent=0 // pred_check
    _
  $region3: #{tile.8} parent=0 // pred_check_branch
    %3 = sbr.rel (0) target = $region5
  $region4: #{tile.8} parent=0 // pred_region
    _
  $region5: #{tile.8} parent=0 // pred_fallthru
    _
  %v4 = vld [vmem:[%s0] ss:$0 sm:$0xff]
  %5 = vst [vmem:[%s1] sm:$0xff] %v4
  %s6 = scalar_lea.vmem %s1, 8
  %7 = vst [vmem:[%s6] sm:$0xff] %v4

// kernel: tile.9
$region0: #{tile.9}
  %s0 = inlined_call_operand.vmem [shape: f32[16,8], index: 0, kind: input, shape index: {}]
  %s1 = inlined_call_operand.vmem [shape: f32[1,128], index: 1, kind: output, shape index: {}]
  $region1: #{tile.9} parent=0
    #allocation0 [shape = 'u8[4096]{0}', space=vmem, size = 0x1000, scoped, tag = 'scoped mem for output reshape']
    %v2 = vld [vmem:[%s0] sm:$0x1]
    %vm3 = vcmask 64512
    %4 = vst.msk [vmem:[#allocation0] sm:$0x1] %vm3, %v2
    %s5 = scalar_lea.vmem %s0, 15
    %v6 = vld [vmem:[%s5] sm:$0x1]
    %7 = vrot.lane.b32.xlu0 %v6, 120
    %v8 = vpop.permute.xlu0 %7
    %vm9 = vcmask 1048512
    %10 = vst.msk [vmem:[#allocation0] sm:$0x1] %vm9, %v8
    %s11 = scalar_lea.vmem %s0, 14
    %v12 = vld [vmem:[%s11] sm:$0x1]
    %13 = vrot.lane.b32.xlu0 %v12, 112
    %v14 = vpop.permute.xlu0 %13
    %vm15 = vcmask 982912
    %16 = vst.msk [vmem:[#allocation0] sm:$0x1] %vm15, %v14
    %s17 = scalar_lea.vmem %s0, 13
    %v18 = vld [vmem:[%s17] sm:$0x1]
    %19 = vrot.lane.b32.xlu0 %v18, 104
    %v20 = vpop.permute.xlu0 %19
    %vm21 = vcmask 917312
    %22 = vst.msk [vmem:[#allocation0] sm:$0x1] %vm21, %v20
    %s23 = scalar_lea.vmem %s0, 12
    %v24 = vld [vmem:[%s23] sm:$0x1]
    %25 = vrot.lane.b32.xlu0 %v24, 96
    %v26 = vpop.permute.xlu0 %25
    %vm27 = vcmask 851712
    %28 = vst.msk [vmem:[#allocation0] sm:$0x1] %vm27, %v26
    %s29 = scalar_lea.vmem %s0, 11
    %v30 = vld [vmem:[%s29] sm:$0x1]
    %31 = vrot.lane.b32.xlu0 %v30, 88
    %v32 = vpop.permute.xlu0 %31
    %vm33 = vcmask 786112
    %34 = vst.msk [vmem:[#allocation0] sm:$0x1] %vm33, %v32
    %s35 = scalar_lea.vmem %s0, 10
    %v36 = vld [vmem:[%s35] sm:$0x1]
    %37 = vrot.lane.b32.xlu0 %v36, 80
    %v38 = vpop.permute.xlu0 %37
    %vm39 = vcmask 720512
    %40 = vst.msk [vmem:[#allocation0] sm:$0x1] %vm39, %v38
    %s41 = scalar_lea.vmem %s0, 9
    %v42 = vld [vmem:[%s41] sm:$0x1]
    %43 = vrot.lane.b32.xlu0 %v42, 72
    %v44 = vpop.permute.xlu0 %43
    %vm45 = vcmask 654912
    %46 = vst.msk [vmem:[#allocation0] sm:$0x1] %vm45, %v44
    %s47 = scalar_lea.vmem %s0, 8
    %v48 = vld [vmem:[%s47] sm:$0x1]
    %49 = vrot.lane.b32.xlu0 %v48, 64
    %v50 = vpop.permute.xlu0 %49
    %vm51 = vcmask 589312
    %52 = vst.msk [vmem:[#allocation0] sm:$0x1] %vm51, %v50
    %s53 = scalar_lea.vmem %s0, 7
    %v54 = vld [vmem:[%s53] sm:$0x1]
    %55 = vrot.lane.b32.xlu0 %v54, 56
    %v56 = vpop.permute.xlu0 %55
    %vm57 = vcmask 523712
    %58 = vst.msk [vmem:[#allocation0] sm:$0x1] %vm57, %v56
    %s59 = scalar_lea.vmem %s0, 6
    %v60 = vld [vmem:[%s59] sm:$0x1]
    %61 = vrot.lane.b32.xlu0 %v60, 48
    %v62 = vpop.permute.xlu0 %61
    %vm63 = vcmask 458112
    %64 = vst.msk [vmem:[#allocation0] sm:$0x1] %vm63, %v62
    %s65 = scalar_lea.vmem %s0, 5
    %v66 = vld [vmem:[%s65] sm:$0x1]
    %67 = vrot.lane.b32.xlu0 %v66, 40
    %v68 = vpop.permute.xlu0 %67
    %vm69 = vcmask 392512
    %70 = vst.msk [vmem:[#allocation0] sm:$0x1] %vm69, %v68
    %s71 = scalar_lea.vmem %s0, 4
    %v72 = vld [vmem:[%s71] sm:$0x1]
    %73 = vrot.lane.b32.xlu0 %v72, 32
    %v74 = vpop.permute.xlu0 %73
    %vm75 = vcmask 326912
    %76 = vst.msk [vmem:[#allocation0] sm:$0x1] %vm75, %v74
    %s77 = scalar_lea.vmem %s0, 3
    %v78 = vld [vmem:[%s77] sm:$0x1]
    %79 = vrot.lane.b32.xlu0 %v78, 24
    %v80 = vpop.permute.xlu0 %79
    %vm81 = vcmask 261312
    %82 = vst.msk [vmem:[#allocation0] sm:$0x1] %vm81, %v80
    %s83 = scalar_lea.vmem %s0, 2
    %v84 = vld [vmem:[%s83] sm:$0x1]
    %85 = vrot.lane.b32.xlu0 %v84, 16
    %v86 = vpop.permute.xlu0 %85
    %vm87 = vcmask 195712
    %88 = vst.msk [vmem:[#allocation0] sm:$0x1] %vm87, %v86
    %s89 = scalar_lea.vmem %s0, 1
    %v90 = vld [vmem:[%s89] sm:$0x1]
    %91 = vrot.lane.b32.xlu0 %v90, 8
    %v92 = vpop.permute.xlu0 %91
    %vm93 = vcmask 130112
    %94 = vst.msk [vmem:[#allocation0] sm:$0x1] %vm93, %v92
    %s96 = sshllo.u32 0, 1
    %v98 = vld [vmem:[#allocation0] sm:%s96]
    %s99 = sshllo.u32 0, 1
    %100 = vst [vmem:[%s1] sm:%s99] %v98

// kernel: conv3x3_forward.1
$region0: #{conv3x3_forward.1}
  #allocation0 [shape = 'u32[]', space=smem, size = 0x4, offset = 0x4, fixed_abs, tag = 'smem constant byte address 0x4 - core index']
  #allocation1 [shape = 'u32[144,128]{1,0:T(1,128)}', space=vmem, size = 0x12000, scoped, tag = 'internal scratch']
  %s0 = inlined_call_operand.vmem [shape: f32[2,16,64], index: 0, kind: input, shape index: {}]
  %s1 = inlined_call_operand.vmem [shape: f32[3,64,128], index: 1, kind: input, shape index: {}]
  %s2 = inlined_call_operand.vmem [shape: f32[1,128], index: 2, kind: input, shape index: {}]
  %s3 = inlined_call_operand.vmem [shape: f32[32,128], index: 3, kind: output, shape index: {}]
  %s4 = sld [smem:[#allocation0]]
  $region45: #{conv3x3_forward.1} parent=0
    _
  %s6 = ssub.s32 1, %s4
  %s7 = scalar_select 0, %s6, %s4
  loop: start=0, step=1, limit=4
  $region2: #{conv3x3_forward.1} parent=0 // loop_pre_header
    _
  $region3: #{conv3x3_forward.1} parent=0 // loop_header
    %s9 = sphi 0, %s13
    %p10 = scmp.ge.s32.totalorder %s9, 4
    %s19 = sphi 0, %s21
    %s22 = sphi 0, %s19
    %s23 = sphi 0, %s22
    %s39 = sphi 0, %s23
    %s43 = sphi 0, %s43
    %s45 = sphi 0, %s43
    %s46 = sphi 0, %s45
    %s60 = sphi 0, %s46
    %s64 = sphi 0, %s64
    %s66 = sphi 0, %s64
    %s67 = sphi 0, %s66
    %s81 = sphi 0, %s67
    %s87 = sphi 0, %s89
    %s90 = sphi 0, %s87
    %s91 = sphi 0, %s90
    %s107 = sphi 0, %s91
  $region4: #{conv3x3_forward.1} parent=0 // loop_header_branch
    %12 = sbr.rel (%p10) target = $region8
  $region5: #{conv3x3_forward.1} parent=0 // loop_body
    %s14 = ssub.s32 %s9, 1
    %s15 = ssub.s32 %s9, 2
    %s16 = sadd.s32 %s9, 1
    %s17 = ssub.s32 %s9, %s16
    %p18 = scmp.eq.s32.totalorder %s17, 0
    %s20 = sadd.s32 %s19, 1
    %s21 = scalar_select %p18, %s19, %s20
    %p24 = pneg %p18
    %p25 = scmp.eq.s32.totalorder %s9, 1
    %p26 = por %p24, %p25
    %p27 = scmp.ne.s32.totalorder %s19, %s22
    %p28 = scmp.eq.s32.totalorder %s9, 0
    %p29 = por %p27, %p28
    %p30 = scmp.ne.s32.totalorder %s19, %s22
    %p31 = scmp.eq.s32.totalorder %s14, 1
    %p32 = por %p30, %p31
    %p33 = scmp.ne.s32.totalorder %s22, %s23
    %p34 = scmp.eq.s32.totalorder %s14, 0
    %p35 = por %p33, %p34
    %p36 = scmp.ne.s32.totalorder %s22, %s23
    %p37 = scmp.eq.s32.totalorder %s15, 1
    %p38 = por %p36, %p37
    %p40 = scmp.ne.s32.totalorder %s23, %s39
    %p41 = scmp.eq.s32.totalorder %s15, 0
    %p42 = por %p40, %p41
    %s44 = sadd.s32 %s43, 1
    %p47 = scmp.eq.s32.totalorder %s9, 1
    %p48 = scmp.ne.s32.totalorder %s43, %s45
    %p49 = scmp.eq.s32.totalorder %s9, 0
    %p50 = por %p48, %p49
    %p51 = scmp.ne.s32.totalorder %s43, %s45
    %p52 = scmp.eq.s32.totalorder %s14, 1
    %p53 = por %p51, %p52
    %p54 = scmp.ne.s32.totalorder %s45, %s46
    %p55 = scmp.eq.s32.totalorder %s14, 0
    %p56 = por %p54, %p55
    %p57 = scmp.ne.s32.totalorder %s45, %s46
    %p58 = scmp.eq.s32.totalorder %s15, 1
    %p59 = por %p57, %p58
    %p61 = scmp.ne.s32.totalorder %s46, %s60
    %p62 = scmp.eq.s32.totalorder %s15, 0
    %p63 = por %p61, %p62
    %s65 = sadd.s32 %s64, 1
    %p68 = scmp.eq.s32.totalorder %s9, 1
    %p69 = scmp.ne.s32.totalorder %s64, %s66
    %p70 = scmp.eq.s32.totalorder %s9, 0
    %p71 = por %p69, %p70
    %p72 = scmp.ne.s32.totalorder %s64, %s66
    %p73 = scmp.eq.s32.totalorder %s14, 1
    %p74 = por %p72, %p73
    %p75 = scmp.ne.s32.totalorder %s66, %s67
    %p76 = scmp.eq.s32.totalorder %s14, 0
    %p77 = por %p75, %p76
    %p78 = scmp.ne.s32.totalorder %s66, %s67
    %p79 = scmp.eq.s32.totalorder %s15, 1
    %p80 = por %p78, %p79
    %p82 = scmp.ne.s32.totalorder %s67, %s81
    %p83 = scmp.eq.s32.totalorder %s15, 0
    %p84 = por %p82, %p83
    %s85 = ssub.s32 %s9, %s16
    %p86 = scmp.eq.s32.totalorder %s85, 0
    %s88 = sadd.s32 %s87, 1
    %s89 = scalar_select %p86, %s87, %s88
    %p92 = pneg %p86
    %p93 = scmp.eq.s32.totalorder %s9, 1
    %p94 = por %p92, %p93
    %p95 = scmp.ne.s32.totalorder %s87, %s90
    %p96 = scmp.eq.s32.totalorder %s9, 0
    %p97 = por %p95, %p96
    %p98 = scmp.ne.s32.totalorder %s87, %s90
    %p99 = scmp.eq.s32.totalorder %s14, 1
    %p100 = por %p98, %p99
    %p101 = scmp.ne.s32.totalorder %s90, %s91
    %p102 = scmp.eq.s32.totalorder %s14, 0
    %p103 = por %p101, %p102
    %p104 = scmp.ne.s32.totalorder %s90, %s91
    %p105 = scmp.eq.s32.totalorder %s15, 1
    %p106 = por %p104, %p105
    %p108 = scmp.ne.s32.totalorder %s91, %s107
    %p109 = scmp.eq.s32.totalorder %s15, 0
    %p110 = por %p108, %p109
    %p111 = scmp.le.s32.totalorder 1, %s9
    %p112 = scmp.lt.s32.totalorder %s9, 3
    %p113 = pnand %p111, %p112
    %p114 = pneg %p113
    // Predicated region
    $region9: #{conv3x3_forward.1} parent=5 // pred_check
      _
    $region10: #{conv3x3_forward.1} parent=5 // pred_check_branch
      %116 = sbr.rel (%p113) target = $region12
    $region11: #{conv3x3_forward.1} parent=5 // pred_region
      %s117 = ssub.s32 %s9, 1
      // Predicated region
      $region13: #{conv3x3_forward.1} parent=11 // pred_check
        %p118 = pneg %p56
      $region14: #{conv3x3_forward.1} parent=11 // pred_check_branch
        %120 = sbr.rel (%p118) target = $region16
      $region15: #{conv3x3_forward.1} parent=11 // pred_region
        _
      $region16: #{conv3x3_forward.1} parent=11 // pred_fallthru
        _
      // Predicated region
      $region17: #{conv3x3_forward.1} parent=11 // pred_check
        %p121 = pneg %p77
      $region18: #{conv3x3_forward.1} parent=11 // pred_check_branch
        %123 = sbr.rel (%p121) target = $region20
      $region19: #{conv3x3_forward.1} parent=11 // pred_region
        _
      $region20: #{conv3x3_forward.1} parent=11 // pred_fallthru
        _
    $region12: #{conv3x3_forward.1} parent=5 // pred_fallthru
      _
    %p124 = scmp.lt.s32.totalorder %s9, 2
    // Predicated region
    $region21: #{conv3x3_forward.1} parent=5 // pred_check
      %p125 = pneg %p124
    $region22: #{conv3x3_forward.1} parent=5 // pred_check_branch
      %127 = sbr.rel (%p125) target = $region24
    $region23: #{conv3x3_forward.1} parent=5 // pred_region
      // Predicated region
      $region25: #{conv3x3_forward.1} parent=23 // pred_check
        %p128 = pneg %p29
      $region26: #{conv3x3_forward.1} parent=23 // pred_check_branch
        %130 = sbr.rel (%p128) target = $region28
      $region27: #{conv3x3_forward.1} parent=23 // pred_region
        %p131 = scmp.lt.s32.totalorder %s9, 1
        %s132 = scalar_select %p131, %s9, 1
        %s133 = smul.addr %s132, 2
        %s134 = smul.addr %s133, 8
        %s135 = scalar_lea.vmem %s0, %s134
      $region28: #{conv3x3_forward.1} parent=23 // pred_fallthru
        _
    $region24: #{conv3x3_forward.1} parent=5 // pred_fallthru
      _
    %p136 = scmp.le.s32.totalorder 1, %s9
    %p137 = scmp.lt.s32.totalorder %s9, 3
    %p138 = pnand %p136, %p137
    %p139 = pneg %p138
    // Predicated region
    $region29: #{conv3x3_forward.1} parent=5 // pred_check
      _
    $region30: #{conv3x3_forward.1} parent=5 // pred_check_branch
      %141 = sbr.rel (%p138) target = $region32
    $region31: #{conv3x3_forward.1} parent=5 // pred_region
      %s142 = ssub.s32 %s9, 1
      %p143 = scmp.lt.s32.totalorder %s14, 1
      %s144 = scalar_select %p143, %s14, 1
      %s145 = smul.addr %s144, 2
      %s146 = smul.addr %s145, 8
      %s147 = scalar_lea.vmem %s0, %s146
      %p148 = pneg %p35
      %p149 = pneg %p32
      %p150 = pneg %p56
      %p151 = pneg %p53
      %p152 = pneg %p77
      %p153 = pneg %p74
      %p154 = pneg %p103
      %p155 = pneg %p100
      %s156 = smul.u32 2, %s14
      %p157 = scmp.lt.s32.totalorder %s156, 3
      %s158 = scalar_select %p157, %s156, 3
      %s159 = smul.addr %s158, 8
      %s160 = scalar_lea.vmem %s3, %s159
      %p161 = scmp.lt.s32.totalorder %s14, 1
      %s162 = scalar_select %p161, %s14, 1
      %s163 = smul.addr %s162, 2
      %s164 = smul.addr %s163, 8
      %s165 = scalar_lea.vmem %s0, %s164
      %s166 = smul.u32 2, %s14
      %p167 = scmp.lt.s32.totalorder %s166, 3
      %s168 = scalar_select %p167, %s166, 3
      %s169 = smul.addr %s168, 8
      %s170 = scalar_lea.vmem %s3, %s169
      %s171 = smul.u32 2, %s14
      %v172 = vld [vmem:[%s165] sm:$0xff]
      %v173 = vld [vmem:[%s165 + $0x8] sm:$0xff]
      %s174 = scalar_lea.vmem %s1, 64
      %v175 = vld [vmem:[%s174] sm:$0xff]
      %v176 = vld [vmem:[%s174 + $0x8] sm:$0xff]
      %v177 = vld [vmem:[%s174 + $0x10] sm:$0xff]
      %v178 = vld [vmem:[%s174 + $0x18] sm:$0xff]
      %v179 = vld [vmem:[%s174 + $0x20] sm:$0xff]
      %v180 = vld [vmem:[%s174 + $0x28] sm:$0xff]
      %v181 = vld [vmem:[%s174 + $0x30] sm:$0xff]
      %v182 = vld [vmem:[%s174 + $0x38] sm:$0xff]
      %v183 = vld [vmem:[%s2] sm:$0x1]
      %v185 = vlaneseq
      %v186 = vshrl.u32 %v185, 7
      %v187 = vsub.s32 0, %v186
      %v188 = vrot.slane %v183, %v187
      %vm190 = vcmask 523264
      %v192 = vsel %vm190, %v172, 0
      %v195 = vsel %vm190, %v173, 0
      %197 = vmatprep.subr.mxu0 0.0
      %198 = vmatpush1.msra.mxu0 %v175
      %199 = vmatprep.subr.mxu0 0.0
      %200 = vmatpush1.msra.mxu0 %v176
      %201 = vmatprep.subr.mxu0 0.0
      %202 = vmatpush1.msra.mxu0 %v177
      %203 = vmatprep.subr.mxu0 0.0
      %204 = vmatpush1.msra.mxu0 %v178
      %205 = vmatprep.subr.mxu0 0.0
      %206 = vmatpush1.msra.mxu0 %v179
      %207 = vmatprep.subr.mxu0 0.0
      %208 = vmatpush1.msra.mxu0 %v180
      %209 = vmatprep.subr.mxu0 0.0
      %210 = vmatpush1.msra.mxu0 %v181
      %211 = vmatprep.subr.mxu0 0.0
      %212 = vmatpush1.msra.mxu0 %v182
      %213 = vmatprep.subr.mxu0 0.0
      %214 = vmatpush1.msra.mxu0 0.0
      %215 = vmatprep.subr.mxu0 0.0
      %216 = vmatpush1.msra.mxu0 0.0
      %217 = vmatprep.subr.mxu0 0.0
      %218 = vmatpush1.msra.mxu0 0.0
      %219 = vmatprep.subr.mxu0 0.0
      %220 = vmatpush1.msra.mxu0 0.0
      %221 = vmatprep.subr.mxu0 0.0
      %222 = vmatpush1.msra.mxu0 0.0
      %223 = vmatprep.subr.mxu0 0.0
      %224 = vmatpush1.msra.mxu0 0.0
      %225 = vmatprep.subr.mxu0 0.0
      %226 = vmatpush1.msra.mxu0 0.0
      %227 = vmatprep.subr.mxu0 0.0
      %228 = vmatpush1.msra.mxu0 0.0
      %229 = vmatprep.subr.mxu0 0.0
      %230 = vmatpush1.msra.mxu0 0.0
      %231 = vmatprep.subr.mxu0 0.0
      %232 = vmatpush1.msra.mxu0 0.0
      %233 = vmatprep.subr.mxu0 0.0
      %234 = vmatpush1.msra.mxu0 0.0
      %235 = vmatprep.subr.mxu0 0.0
      %236 = vmatpush1.msra.mxu0 0.0
      %237 = vmatprep.subr.mxu0 0.0
      %238 = vmatpush1.msra.mxu0 0.0
      %239 = vmatprep.subr.mxu0 0.0
      %240 = vmatpush1.msra.mxu0 0.0
      %241 = vmatprep.subr.mxu0 0.0
      %242 = vmatpush1.msra.mxu0 0.0
      %243 = vmatprep.subr.mxu0 0.0
      %244 = vmatpush1.msra.mxu0 0.0
      %245 = vmatprep.subr.mxu0 0.0
      %246 = vmatpush1.msra.mxu0 0.0
      %247 = vmatprep.subr.mxu0 0.0
      %248 = vmatpush1.msra.mxu0 0.0
      %249 = vmatprep.subr.mxu0 0.0
      %250 = vmatpush1.msra.mxu0 0.0
      %251 = vmatprep.subr.mxu0 0.0
      %252 = vmatpush1.msra.mxu0 0.0
      %253 = vmatprep.subr.mxu0 0.0
      %254 = vmatpush1.msra.mxu0 0.0
      %255 = vmatprep.subr.mxu0 0.0
      %256 = vmatpush1.msra.mxu0 0.0
      %257 = vmatprep.subr.mxu0 0.0
      %258 = vmatpush1.msra.mxu0 0.0
      %259 = vmatprep.subr.mxu0 0.0
      %260 = vmatpush1.msra.mxu0 0.0
      %261 = vmatprep.mubr.f32.mxu0 0.0
      %262 = vmatmul.mubr.f32.gmra.mrb[0].mxu0 %v192
      %v263 = vpop.f32.mrb[0].mxu0
      %v264 = vadd.f32 %v188, %v263
      %v265 = vpop.f32.mrb[0].mxu0
      %266 = vmatprep.mubr.f32.mxu0 0.0
      %267 = vmatmul.mubr.f32.gmra.mrb[0].mxu0 %v195
      %v268 = vpop.f32.mrb[0].mxu0
      %v269 = vadd.f32 %v188, %v268
      %v270 = vpop.f32.mrb[0].mxu0
      %271 = vdwg.mxu0
      %272 = vst [vmem:[%s170] sm:$0xff] %v264
      %273 = vst [vmem:[%s170 + $0x8] sm:$0xff] %v269
      %v274 = vld [vmem:[%s170 + $0x1] sm:$0xff]
      %v275 = vld [vmem:[%s170 + $0x9] sm:$0x7f]
      %v276 = vld [vmem:[%s1] sm:$0xff]
      %v277 = vld [vmem:[%s1 + $0x8] sm:$0xff]
      %v278 = vld [vmem:[%s1 + $0x10] sm:$0xff]
      %v279 = vld [vmem:[%s1 + $0x18] sm:$0xff]
      %v280 = vld [vmem:[%s1 + $0x20] sm:$0xff]
      %v281 = vld [vmem:[%s1 + $0x28] sm:$0xff]
      %v282 = vld [vmem:[%s1 + $0x30] sm:$0xff]
      %v283 = vld [vmem:[%s1 + $0x38] sm:$0xff]
      %284 = vmatprep.subr.mxu0 0.0
      %285 = vmatpush1.msra.mxu0 %v276
      %286 = vmatprep.subr.mxu0 0.0
      %287 = vmatpush1.msra.mxu0 %v277
      %288 = vmatprep.subr.mxu0 0.0
      %289 = vmatpush1.msra.mxu0 %v278
      %290 = vmatprep.subr.mxu0 0.0
      %291 = vmatpush1.msra.mxu0 %v279
      %292 = vmatprep.subr.mxu0 0.0
      %293 = vmatpush1.msra.mxu0 %v280
      %294 = vmatprep.subr.mxu0 0.0
      %295 = vmatpush1.msra.mxu0 %v281
      %296 = vmatprep.subr.mxu0 0.0
      %297 = vmatpush1.msra.mxu0 %v282
      %298 = vmatprep.subr.mxu0 0.0
      %299 = vmatpush1.msra.mxu0 %v283
      %300 = vmatprep.subr.mxu0 0.0
      %301 = vmatpush1.msra.mxu0 0.0
      %302 = vmatprep.subr.mxu0 0.0
      %303 = vmatpush1.msra.mxu0 0.0
      %304 = vmatprep.subr.mxu0 0.0
      %305 = vmatpush1.msra.mxu0 0.0
      %306 = vmatprep.subr.mxu0 0.0
      %307 = vmatpush1.msra.mxu0 0.0
      %308 = vmatprep.subr.mxu0 0.0
      %309 = vmatpush1.msra.mxu0 0.0
      %310 = vmatprep.subr.mxu0 0.0
      %311 = vmatpush1.msra.mxu0 0.0
      %312 = vmatprep.subr.mxu0 0.0
      %313 = vmatpush1.msra.mxu0 0.0
      %314 = vmatprep.subr.mxu0 0.0
      %315 = vmatpush1.msra.mxu0 0.0
      %316 = vmatprep.subr.mxu0 0.0
      %317 = vmatpush1.msra.mxu0 0.0
      %318 = vmatprep.subr.mxu0 0.0
      %319 = vmatpush1.msra.mxu0 0.0
      %320 = vmatprep.subr.mxu0 0.0
      %321 = vmatpush1.msra.mxu0 0.0
      %322 = vmatprep.subr.mxu0 0.0
      %323 = vmatpush1.msra.mxu0 0.0
      %324 = vmatprep.subr.mxu0 0.0
      %325 = vmatpush1.msra.mxu0 0.0
      %326 = vmatprep.subr.mxu0 0.0
      %327 = vmatpush1.msra.mxu0 0.0
      %328 = vmatprep.subr.mxu0 0.0
      %329 = vmatpush1.msra.mxu0 0.0
      %330 = vmatprep.subr.mxu0 0.0
      %331 = vmatpush1.msra.mxu0 0.0
      %332 = vmatprep.subr.mxu0 0.0
      %333 = vmatpush1.msra.mxu0 0.0
      %334 = vmatprep.subr.mxu0 0.0
      %335 = vmatpush1.msra.mxu0 0.0
      %336 = vmatprep.subr.mxu0 0.0
      %337 = vmatpush1.msra.mxu0 0.0
      %338 = vmatprep.subr.mxu0 0.0
      %339 = vmatpush1.msra.mxu0 0.0
      %340 = vmatprep.subr.mxu0 0.0
      %341 = vmatpush1.msra.mxu0 0.0
      %342 = vmatprep.subr.mxu0 0.0
      %343 = vmatpush1.msra.mxu0 0.0
      %344 = vmatprep.subr.mxu0 0.0
      %345 = vmatpush1.msra.mxu0 0.0
      %346 = vmatprep.subr.mxu0 0.0
      %347 = vmatpush1.msra.mxu0 0.0
      %348 = vmatprep.mubr.f32.mxu0 0.0
      %349 = vmatmul.mubr.f32.gmra.mrb[0].mxu0 %v192
      %v350 = vpop.f32.mrb[0].mxu0
      %v351 = vadd.f32 0.0, %v350
      %v352 = vpop.f32.mrb[0].mxu0
      %353 = vmatprep.mubr.f32.mxu0 0.0
      %354 = vmatmul.mubr.f32.gmra.mrb[0].mxu0 %v195
      %v355 = vpop.f32.mrb[0].mxu0
      %v356 = vadd.f32 0.0, %v355
      %v357 = vpop.f32.mrb[0].mxu0
      %358 = vdwg.mxu0
      %v359 = vadd.f32 %v274, %v351
      %v360 = vadd.f32 %v275, %v356
      %361 = vst [vmem:[%s170 + $0x1] sm:$0xff] %v359
      %362 = vst [vmem:[%s170 + $0x9] sm:$0x7f] %v360
      %v363 = vld [vmem:[%s170] sm:$0xff]
      %v364 = vld [vmem:[%s170 + $0x8] sm:$0x7f]
      %s365 = scalar_lea.vmem %s1, 128
      %v366 = vld [vmem:[%s365] sm:$0xff]
      %v367 = vld [vmem:[%s365 + $0x8] sm:$0xff]
      %v368 = vld [vmem:[%s365 + $0x10] sm:$0xff]
      %v369 = vld [vmem:[%s365 + $0x18] sm:$0xff]
      %v370 = vld [vmem:[%s365 + $0x20] sm:$0xff]
      %v371 = vld [vmem:[%s365 + $0x28] sm:$0xff]
      %v372 = vld [vmem:[%s365 + $0x30] sm:$0xff]
      %v373 = vld [vmem:[%s365 + $0x38] sm:$0xff]
      %vm374 = vcmask 1046528
      %v375 = vrot.slane %v172, 1
      %v376 = vrot.slane %v173, 1
      %v377 = vsel %vm374, %v375, %v376
      %v378 = vsel %vm190, %v377, 0
      %v380 = vsel %vm190, %v376, 0
      %382 = vmatprep.subr.mxu0 0.0
      %383 = vmatpush1.msra.mxu0 %v366
      %384 = vmatprep.subr.mxu0 0.0
      %385 = vmatpush1.msra.mxu0 %v367
      %386 = vmatprep.subr.mxu0 0.0
      %387 = vmatpush1.msra.mxu0 %v368
      %388 = vmatprep.subr.mxu0 0.0
      %389 = vmatpush1.msra.mxu0 %v369
      %390 = vmatprep.subr.mxu0 0.0
      %391 = vmatpush1.msra.mxu0 %v370
      %392 = vmatprep.subr.mxu0 0.0
      %393 = vmatpush1.msra.mxu0 %v371
      %394 = vmatprep.subr.mxu0 0.0
      %395 = vmatpush1.msra.mxu0 %v372
      %396 = vmatprep.subr.mxu0 0.0
      %397 = vmatpush1.msra.mxu0 %v373
      %398 = vmatprep.subr.mxu0 0.0
      %399 = vmatpush1.msra.mxu0 0.0
      %400 = vmatprep.subr.mxu0 0.0
      %401 = vmatpush1.msra.mxu0 0.0
      %402 = vmatprep.subr.mxu0 0.0
      %403 = vmatpush1.msra.mxu0 0.0
      %404 = vmatprep.subr.mxu0 0.0
      %405 = vmatpush1.msra.mxu0 0.0
      %406 = vmatprep.subr.mxu0 0.0
      %407 = vmatpush1.msra.mxu0 0.0
      %408 = vmatprep.subr.mxu0 0.0
      %409 = vmatpush1.msra.mxu0 0.0
      %410 = vmatprep.subr.mxu0 0.0
      %411 = vmatpush1.msra.mxu0 0.0
      %412 = vmatprep.subr.mxu0 0.0
      %413 = vmatpush1.msra.mxu0 0.0
      %414 = vmatprep.subr.mxu0 0.0
      %415 = vmatpush1.msra.mxu0 0.0
      %416 = vmatprep.subr.mxu0 0.0
      %417 = vmatpush1.msra.mxu0 0.0
      %418 = vmatprep.subr.mxu0 0.0
      %419 = vmatpush1.msra.mxu0 0.0
      %420 = vmatprep.subr.mxu0 0.0
      %421 = vmatpush1.msra.mxu0 0.0
      %422 = vmatprep.subr.mxu0 0.0
      %423 = vmatpush1.msra.mxu0 0.0
      %424 = vmatprep.subr.mxu0 0.0
      %425 = vmatpush1.msra.mxu0 0.0
      %426 = vmatprep.subr.mxu0 0.0
      %427 = vmatpush1.msra.mxu0 0.0
      %428 = vmatprep.subr.mxu0 0.0
      %429 = vmatpush1.msra.mxu0 0.0
      %430 = vmatprep.subr.mxu0 0.0
      %431 = vmatpush1.msra.mxu0 0.0
      %432 = vmatprep.subr.mxu0 0.0
      %433 = vmatpush1.msra.mxu0 0.0
      %434 = vmatprep.subr.mxu0 0.0
      %435 = vmatpush1.msra.mxu0 0.0
      %436 = vmatprep.subr.mxu0 0.0
      %437 = vmatpush1.msra.mxu0 0.0
      %438 = vmatprep.subr.mxu0 0.0
      %439 = vmatpush1.msra.mxu0 0.0
      %440 = vmatprep.subr.mxu0 0.0
      %441 = vmatpush1.msra.mxu0 0.0
      %442 = vmatprep.subr.mxu0 0.0
      %443 = vmatpush1.msra.mxu0 0.0
      %444 = vmatprep.subr.mxu0 0.0
      %445 = vmatpush1.msra.mxu0 0.0
      %446 = vmatprep.mubr.f32.mxu0 0.0
      %447 = vmatmul.mubr.f32.gmra.mrb[0].mxu0 %v378
      %v448 = vpop.f32.mrb[0].mxu0
      %v449 = vadd.f32 0.0, %v448
      %v450 = vpop.f32.mrb[0].mxu0
      %451 = vmatprep.mubr.f32.mxu0 0.0
      %452 = vmatmul.mubr.f32.gmra.mrb[0].mxu0 %v380
      %v453 = vpop.f32.mrb[0].mxu0
      %v454 = vadd.f32 0.0, %v453
      %v455 = vpop.f32.mrb[0].mxu0
      %456 = vdwg.mxu0
      %v457 = vadd.f32 %v363, %v449
      %v458 = vadd.f32 %v364, %v454
      %459 = vst [vmem:[%s170] sm:$0xff] %v457
      %460 = vst [vmem:[%s170 + $0x8] sm:$0x7f] %v458
      %s461 = smul.u32 2, %s14
      %p462 = scmp.lt.s32.totalorder %s461, 3
      %s463 = scalar_select %p462, %s461, 3
      %s464 = smul.addr %s463, 8
      %s465 = scalar_lea.vmem %s3, %s464
      // Predicated region
      $region33: #{conv3x3_forward.1} parent=31 // pred_check
        %p466 = pneg %p100
      $region34: #{conv3x3_forward.1} parent=31 // pred_check_branch
        %468 = sbr.rel (%p466) target = $region36
      $region35: #{conv3x3_forward.1} parent=31 // pred_region
        %s469 = smul.u32 2, %s14
      $region36: #{conv3x3_forward.1} parent=31 // pred_fallthru
        _
    $region32: #{conv3x3_forward.1} parent=5 // pred_fallthru
      _
    %p470 = scmp.le.s32.totalorder 2, %s9
    // Predicated region
    $region37: #{conv3x3_forward.1} parent=5 // pred_check
      %p471 = pneg %p470
    $region38: #{conv3x3_forward.1} parent=5 // pred_check_branch
      %473 = sbr.rel (%p471) target = $region40
    $region39: #{conv3x3_forward.1} parent=5 // pred_region
      %s474 = ssub.s32 %s9, 2
      // Predicated region
      $region41: #{conv3x3_forward.1} parent=39 // pred_check
        %p475 = pneg %p106
      $region42: #{conv3x3_forward.1} parent=39 // pred_check_branch
        %477 = sbr.rel (%p475) target = $region44
      $region43: #{conv3x3_forward.1} parent=39 // pred_region
        %s478 = smul.u32 2, %s15
        %p479 = scmp.lt.s32.totalorder %s478, 3
        %s480 = scalar_select %p479, %s478, 3
        %s481 = smul.addr %s480, 8
        %s482 = scalar_lea.vmem %s3, %s481
      $region44: #{conv3x3_forward.1} parent=39 // pred_fallthru
        _
    $region40: #{conv3x3_forward.1} parent=5 // pred_fallthru
      _
  $region6: #{conv3x3_forward.1} parent=0 // loop_footer
    %s13 = sadd.s32 1, %s9
  $region7: #{conv3x3_forward.1} parent=0 // loop_footer_branch
    %8 = sbr.rel target = $region3
  $region8: #{conv3x3_forward.1} parent=0 // loop_exit
    _

</llo_original>
